<compile_context>
chip_gen: v7x
topology: tpu7x:2x2x1
jax: 0.10.0
libtpu: 0.0.40
codegen_flags: <defaults>
</compile_context>

<pallas_src>
import functools

import jax
import jax.numpy as jnp
from jax.experimental import pallas as pl
from jax.experimental.pallas import tpu as pltpu

LANE = 128


def _round_up(x, m):
    return ((x + m - 1) // m) * m


def _elu(x):
    # ELU(alpha=1): x if x > 0 else exp(x) - 1.
    # exp may overflow on the positive side but that branch is selected away (no NaN).
    return jnp.where(x > 0.0, x, jnp.exp(x) - 1.0)


def latent_decoder_kernel(z_ref, c_ref,
                          wz_ref, wc_ref, bzc_ref,
                          wr_ref, br_ref, gm_ref, bt_ref,
                          wp_ref, bp_ref,
                          gp_ref, betap_ref,
                          out_ref,
                          x0_ref,
                          *, n_hidden, batch_size, sample_size, n_valid, use_bf16):
    f32 = jnp.float32
    cast = (lambda x: x.astype(jnp.bfloat16)) if use_bf16 else (lambda x: x)
    n_rows = batch_size * sample_size

    # fc_z on the full (N, Zp) z; fc_c on the *un-replicated* (B, Cp) c.
    ez = jnp.dot(cast(z_ref[...]), cast(wz_ref[...]), preferred_element_type=f32)
    ec = jnp.dot(cast(c_ref[...]), cast(wc_ref[...]), preferred_element_type=f32)
    hp = ez.shape[1]
    # ec.expand_as(ez): replicate each batch row across its sample_size rows.
    # (B,1,Hp)->(B,S,Hp)->(N,Hp); S=8-aligned so this collapse stays tile-local.
    ec_rep = jnp.broadcast_to(ec.reshape(batch_size, 1, hp),
                              (batch_size, sample_size, hp)).reshape(n_rows, hp)
    e = _elu(ez + ec_rep + bzc_ref[...])
    x0_ref[...] = e                       # keep the residual input in VMEM, not in vregs

    # Hoisted once (small (n_hidden, Hp) tables).
    br = br_ref[...]
    gm = gm_ref[...]
    bt = bt_ref[...]

    # FCResBlock: n_hidden x (Linear -> BatchNorm1d(H) -> ELU except after last)
    for i in range(n_hidden):
        e = jnp.dot(cast(e), cast(wr_ref[i]), preferred_element_type=f32) + br[i:i + 1, :]
        # Two-pass (mean-shifted) batch stats: robust to cancellation at large magnitudes.
        # (For very large N these reductions could be done on the MXU via ones(1,N)@[e|e*e].)
        mu = jnp.mean(e, axis=0, keepdims=True)
        d = e - mu
        var = jnp.mean(d * d, axis=0, keepdims=True)
        e = d * (gm[i:i + 1, :] * jax.lax.rsqrt(var + 1e-5)) + bt[i:i + 1, :]
        if i < n_hidden - 1:
            e = _elu(e)

    # residual + nonlinearity
    e = _elu(e + x0_ref[...])

    # fc_params: hidden -> 2*z_dim (padded to LANE)
    p = jnp.dot(cast(e), cast(wp_ref[...]), preferred_element_type=f32) + bp_ref[...]

    # bn_params = BatchNorm1d(1, eps=1e-3): stats over the valid (N, 2*z_dim) elements.
    # The padded columns of p are exactly zero, so reducing the full lane-dense tile
    # (unmasked, no partial-lane slice) leaves sum and sum-of-squares unchanged.
    inv_cnt = 1.0 / float(n_rows * n_valid)
    s1 = jnp.sum(p, keepdims=True)             # (1, 1)
    s2 = jnp.sum(p * p, keepdims=True)         # (1, 1)
    mu = s1 * inv_cnt
    var = s2 * inv_cnt - mu * mu
    gp = gp_ref[0, 0]                          # SMEM scalars
    betap = betap_ref[0, 0]
    a = gp * jax.lax.rsqrt(var + 1e-3)
    b = betap - mu * a

    # Single lane-dense padded output; wrapper slices off padding and splits mean/logvar.
    out_ref[...] = p * a + b


def init_params(key, *, z_dim, c_dim, hidden_dim, n_hidden):
    ks = jax.random.split(key, 8)
    s = 0.05
    params = dict(
        # Linear weights stored as (in, out) for the kernel / reference.
        Wz=jax.random.normal(ks[0], (z_dim, hidden_dim), jnp.float32) * s,
        bz=jax.random.normal(ks[1], (1, hidden_dim), jnp.float32) * s,
        Wc=jax.random.normal(ks[2], (c_dim, hidden_dim), jnp.float32) * s,
        bc=jax.random.normal(ks[3], (1, hidden_dim), jnp.float32) * s,
        Wr=jax.random.normal(ks[4], (n_hidden, hidden_dim, hidden_dim), jnp.float32) * s,
        br=jax.random.normal(ks[5], (n_hidden, hidden_dim), jnp.float32) * s,
        gm=jnp.ones((n_hidden, hidden_dim), jnp.float32),           # BN gamma
        bt=jnp.zeros((n_hidden, hidden_dim), jnp.float32),          # BN beta
        Wp=jax.random.normal(ks[6], (hidden_dim, 2 * z_dim), jnp.float32) * s,
        bp=jax.random.normal(ks[7], (1, 2 * z_dim), jnp.float32) * s,
        gp=jnp.ones((1, 1), jnp.float32),                           # bn_params gamma
        betap=jnp.zeros((1, 1), jnp.float32),                       # bn_params beta
    )
    return params


def pack_params(params, *, z_dim, c_dim, hidden_dim, n_hidden):
    """One-time packing: zero-pad every feature dim to the 128-lane width.

    Padded entries MUST stay exactly zero (gamma included) so the padded columns remain
    zero through the network and the final full-width bn_params sums are untouched.
    """
    H, Hp = hidden_dim, _round_up(hidden_dim, LANE)
    Zp = _round_up(z_dim, LANE)
    Cp = _round_up(c_dim, LANE)
    P, Pp = 2 * z_dim, _round_up(2 * z_dim, LANE)
    f32 = jnp.float32

    Wz = jnp.zeros((Zp, Hp), f32).at[:z_dim, :H].set(params["Wz"])
    Wc = jnp.zeros((Cp, Hp), f32).at[:c_dim, :H].set(params["Wc"])
    bzc = jnp.zeros((1, Hp), f32).at[:, :H].set(params["bz"] + params["bc"])

    Wr = jnp.zeros((n_hidden, Hp, Hp), f32).at[:, :H, :H].set(params["Wr"])
    br = jnp.zeros((n_hidden, Hp), f32).at[:, :H].set(params["br"])
    gm = jnp.zeros((n_hidden, Hp), f32).at[:, :H].set(params["gm"])
    bt = jnp.zeros((n_hidden, Hp), f32).at[:, :H].set(params["bt"])

    Wp = jnp.zeros((Hp, Pp), f32).at[:H, :P].set(params["Wp"])
    bp = jnp.zeros((1, Pp), f32).at[:, :P].set(params["bp"])

    return dict(Wz=Wz, Wc=Wc, bzc=bzc, Wr=Wr, br=br, gm=gm, bt=bt,
                Wp=Wp, bp=bp, gp=params["gp"], betap=params["betap"])


def _nbytes(x):
    return int(x.size) * x.dtype.itemsize


@functools.partial(jax.jit, static_argnames=("batch_size", "sample_size", "z_dim",
                                             "c_dim", "hidden_dim", "n_hidden"))
def latent_decoder_forward(z, c, packed, *, batch_size, sample_size,
                           z_dim, c_dim, hidden_dim, n_hidden):
    N = batch_size * sample_size
    Zp = packed["Wz"].shape[0]
    Cp = packed["Wc"].shape[0]
    Hp = packed["Wz"].shape[1]
    Pp = packed["Wp"].shape[1]

    if z is None:
        # TODO(synk): the z-is-None path in PyTorch uses sample_size=1; here we just feed
        # zeros of the full (B*S, z_dim) shape for the synthetic test.
        z_flat = jnp.zeros((N, z_dim), jnp.float32)
    else:
        z_flat = z.reshape(N, z_dim).astype(jnp.float32)

    # Lane-dense padded inputs; c stays at (B, Cp) -- it is replicated in-kernel, so no
    # (N, z_dim+c_dim) activation is materialized in HBM.
    z_pad = jnp.pad(z_flat, ((0, 0), (0, Zp - z_dim)))
    c_pad = jnp.pad(c.astype(jnp.float32), ((0, 0), (0, Cp - c_dim)))

    vmem = pl.BlockSpec(memory_space=pltpu.MemorySpace.VMEM)
    smem = pl.BlockSpec(memory_space=pltpu.MemorySpace.SMEM)

    kernel = functools.partial(
        latent_decoder_kernel,
        n_hidden=n_hidden, batch_size=batch_size, sample_size=sample_size,
        n_valid=2 * z_dim,
        # bf16 MXU operands (f32 accumulation) once the layers are wide enough that the
        # extra throughput matters; f32 at tiny sizes for bit-closeness with PyTorch f32.
        use_bf16=hidden_dim >= 512)

    operands = (z_pad, c_pad,
                packed["Wz"], packed["Wc"], packed["bzc"],
                packed["Wr"], packed["br"], packed["gm"], packed["bt"],
                packed["Wp"], packed["bp"],
                packed["gp"], packed["betap"])

    # Size the scoped-VMEM limit to the actual resident set (+ generous margin), capped at
    # the v7x physical 64 MiB. On v5e/v6e (128 MiB) the cap may be raised; on v7x, once Wr
    # alone approaches ~20-24 MiB, stream it per layer (grid over n_hidden or pl.ANY +
    # manual double-buffering) instead of raising this further.
    resident = (sum(_nbytes(a) for a in operands)
                + N * Pp * 4          # output
                + N * Hp * 4)         # x0 scratch
    vmem_limit = min(2 * resident + (8 << 20), 64 << 20)

    out = pl.pallas_call(
        kernel,
        out_shape=jax.ShapeDtypeStruct((N, Pp), jnp.float32),
        in_specs=[vmem] * 11 + [smem, smem],
        out_specs=vmem,
        scratch_shapes=[pltpu.VMEM((N, Hp), jnp.float32)],   # x0 residual stash
        compiler_params=pltpu.CompilerParams(vmem_limit_bytes=vmem_limit),
    )(*operands)

    params_out = out[:, :2 * z_dim]
    return params_out[:, :z_dim], params_out[:, z_dim:]


def latent_decoder_reference(z, c, params, *, batch_size, sample_size,
                             z_dim, c_dim, hidden_dim, n_hidden):
    """Pure-JAX mirror of the PyTorch forward (training-mode batch norm, two-pass stats)."""
    N = batch_size * sample_size
    z_flat = z.reshape(N, z_dim)
    ez = z_flat @ params["Wz"] + params["bz"]
    ec = c @ params["Wc"] + params["bc"]
    ec = jnp.repeat(ec, sample_size, axis=0)
    e = _elu(ez + ec)
    x0 = e
    for i in range(n_hidden):
        e = e @ params["Wr"][i] + params["br"][i:i + 1]
        mu = jnp.mean(e, axis=0, keepdims=True)
        var = jnp.mean((e - mu) ** 2, axis=0, keepdims=True)
        e = (e - mu) / jnp.sqrt(var + 1e-5)
        e = e * params["gm"][i:i + 1] + params["bt"][i:i + 1]
        if i < n_hidden - 1:
            e = _elu(e)
    e = _elu(e + x0)
    p = e @ params["Wp"] + params["bp"]
    mu = jnp.mean(p)
    var = jnp.mean((p - mu) ** 2)
    p = (p - mu) / jnp.sqrt(var + 1e-3)
    p = p * params["gp"][0, 0] + params["betap"][0, 0]
    return p[:, :z_dim], p[:, z_dim:]


if __name__ == "__main__":
    # Small shapes consistent with the module's forward.
    batch_size, sample_size = 2, 8
    z_dim, c_dim, hidden_dim, n_hidden = 8, 16, 32, 3

    key = jax.random.PRNGKey(0)
    kz, kc, kp = jax.random.split(key, 3)

    z = jax.random.normal(kz, (batch_size, sample_size, z_dim), jnp.float32)
    c = jax.random.normal(kc, (batch_size, c_dim), jnp.float32)
    params = init_params(kp, z_dim=z_dim, c_dim=c_dim,
                         hidden_dim=hidden_dim, n_hidden=n_hidden)
    packed = pack_params(params, z_dim=z_dim, c_dim=c_dim,
                         hidden_dim=hidden_dim, n_hidden=n_hidden)

    cfg = dict(batch_size=batch_size, sample_size=sample_size,
               z_dim=z_dim, c_dim=c_dim, hidden_dim=hidden_dim,
               n_hidden=n_hidden)

    mean, logvar = latent_decoder_forward(z, c, packed, **cfg)
    jax.block_until_ready((mean, logvar))

    mean_ref, logvar_ref = latent_decoder_reference(z, c, params, **cfg)
    assert mean.shape == (batch_size * sample_size, z_dim)
    assert logvar.shape == (batch_size * sample_size, z_dim)
    assert jnp.allclose(mean, mean_ref, atol=1e-4, rtol=1e-4)
    assert jnp.allclose(logvar, logvar_ref, atol=1e-4, rtol=1e-4)

    print("KERNEL_OK")
</pallas_src>

<mosaic_0001>
module attributes {stable_mosaic.version = 11 : i64} {
  func.func @latent_decoder_kernel(%arg0: memref<16x128xf32, #tpu.memory_space<vmem>>, %arg1: memref<2x128xf32, #tpu.memory_space<vmem>>, %arg2: memref<128x128xf32, #tpu.memory_space<vmem>>, %arg3: memref<128x128xf32, #tpu.memory_space<vmem>>, %arg4: memref<1x128xf32, #tpu.memory_space<vmem>>, %arg5: memref<3x128x128xf32, #tpu.memory_space<vmem>>, %arg6: memref<3x128xf32, #tpu.memory_space<vmem>>, %arg7: memref<3x128xf32, #tpu.memory_space<vmem>>, %arg8: memref<3x128xf32, #tpu.memory_space<vmem>>, %arg9: memref<128x128xf32, #tpu.memory_space<vmem>>, %arg10: memref<1x128xf32, #tpu.memory_space<vmem>>, %arg11: memref<1x1xf32, #tpu.memory_space<smem>>, %arg12: memref<1x1xf32, #tpu.memory_space<smem>>, %arg13: memref<16x128xf32, #tpu.memory_space<vmem>>, %arg14: memref<16x128xf32, #tpu.memory_space<vmem>>) attributes {dimension_semantics = [], scalar_prefetch = 0 : i64, scratch_operands = 1 : i64, tpu.core_type = #tpu.core_type<tc>} {
    %c0 = arith.constant 0 : index
    %c0_0 = arith.constant 0 : index
    %0 = vector.load %arg0[%c0, %c0_0] : memref<16x128xf32, #tpu.memory_space<vmem>>, vector<16x128xf32>
    %c0_1 = arith.constant 0 : index
    %c0_2 = arith.constant 0 : index
    %1 = vector.load %arg2[%c0_1, %c0_2] : memref<128x128xf32, #tpu.memory_space<vmem>>, vector<128x128xf32>
    %cst = arith.constant dense<0.000000e+00> : vector<16x128xf32>
    %2 = tpu.matmul %0, %1, %cst {dimension_numbers = #tpu.dot_dimension_numbers<[1], [0], [0], [1], [0, 0, 1, 1], [], []>} : vector<16x128xf32>, vector<128x128xf32>, vector<16x128xf32> -> vector<16x128xf32>
    %c0_3 = arith.constant 0 : index
    %c0_4 = arith.constant 0 : index
    %3 = vector.load %arg1[%c0_3, %c0_4] : memref<2x128xf32, #tpu.memory_space<vmem>>, vector<2x128xf32>
    %c0_5 = arith.constant 0 : index
    %c0_6 = arith.constant 0 : index
    %4 = vector.load %arg3[%c0_5, %c0_6] : memref<128x128xf32, #tpu.memory_space<vmem>>, vector<128x128xf32>
    %cst_7 = arith.constant dense<0.000000e+00> : vector<2x128xf32>
    %5 = tpu.matmul %3, %4, %cst_7 {dimension_numbers = #tpu.dot_dimension_numbers<[1], [0], [0], [1], [0, 0, 1, 1], [], []>} : vector<2x128xf32>, vector<128x128xf32>, vector<2x128xf32> -> vector<2x128xf32>
    %6 = vector.shape_cast %5 : vector<2x128xf32> to vector<2x1x128xf32>
    %7 = vector.shape_cast %6 : vector<2x1x128xf32> to vector<2x1x128xf32>
    %8 = vector.broadcast %7 : vector<2x1x128xf32> to vector<2x8x128xf32>
    %9 = vector.shape_cast %8 : vector<2x8x128xf32> to vector<16x128xf32>
    %10 = arith.addf %2, %9 : vector<16x128xf32>
    %c0_8 = arith.constant 0 : index
    %c0_9 = arith.constant 0 : index
    %11 = vector.load %arg4[%c0_8, %c0_9] : memref<1x128xf32, #tpu.memory_space<vmem>>, vector<1x128xf32>
    %12 = vector.broadcast %11 : vector<1x128xf32> to vector<16x128xf32>
    %13 = arith.addf %10, %12 : vector<16x128xf32>
    %cst_10 = arith.constant 0.000000e+00 : f32
    %14 = vector.broadcast %cst_10 : f32 to vector<16x128xf32>
    %15 = arith.cmpf ogt, %13, %14 : vector<16x128xf32>
    %16 = math.exp %13 : vector<16x128xf32>
    %cst_11 = arith.constant 1.000000e+00 : f32
    %17 = vector.broadcast %cst_11 : f32 to vector<16x128xf32>
    %18 = arith.subf %16, %17 : vector<16x128xf32>
    %19 = arith.select %15, %13, %18 : vector<16x128xi1>, vector<16x128xf32>
    %c0_12 = arith.constant 0 : index
    %c0_13 = arith.constant 0 : index
    %20 = vector.load %arg14[%c0_12, %c0_13] : memref<16x128xf32, #tpu.memory_space<vmem>>, vector<16x128xf32>
    tpu.vector_store %arg14[%c0_12, %c0_13], %19 {strides = array<i32>} : memref<16x128xf32, #tpu.memory_space<vmem>>, vector<16x128xf32>,
    %c0_14 = arith.constant 0 : index
    %c0_15 = arith.constant 0 : index
    %21 = vector.load %arg6[%c0_14, %c0_15] : memref<3x128xf32, #tpu.memory_space<vmem>>, vector<3x128xf32>
    %c0_16 = arith.constant 0 : index
    %c0_17 = arith.constant 0 : index
    %22 = vector.load %arg7[%c0_16, %c0_17] : memref<3x128xf32, #tpu.memory_space<vmem>>, vector<3x128xf32>
    %c0_18 = arith.constant 0 : index
    %c0_19 = arith.constant 0 : index
    %23 = vector.load %arg8[%c0_18, %c0_19] : memref<3x128xf32, #tpu.memory_space<vmem>>, vector<3x128xf32>
    %c0_20 = arith.constant 0 : index
    %c0_21 = arith.constant 0 : index
    %c0_22 = arith.constant 0 : index
    %24 = vector.load %arg5[%c0_20, %c0_21, %c0_22] : memref<3x128x128xf32, #tpu.memory_space<vmem>>, vector<1x128x128xf32>
    %25 = vector.shape_cast %24 : vector<1x128x128xf32> to vector<128x128xf32>
    %cst_23 = arith.constant dense<0.000000e+00> : vector<16x128xf32>
    %26 = tpu.matmul %19, %25, %cst_23 {dimension_numbers = #tpu.dot_dimension_numbers<[1], [0], [0], [1], [0, 0, 1, 1], [], []>} : vector<16x128xf32>, vector<128x128xf32>, vector<16x128xf32> -> vector<16x128xf32>
    %27 = vector.extract_strided_slice %21 {offsets = [0, 0], sizes = [1, 128], strides = [1, 1]} : vector<3x128xf32> to vector<1x128xf32>
    %28 = vector.broadcast %27 : vector<1x128xf32> to vector<16x128xf32>
    %29 = arith.addf %26, %28 : vector<16x128xf32>
    %cst_24 = arith.constant dense<0.000000e+00> : vector<128xf32>
    %30 = vector.multi_reduction <add>, %29, %cst_24 [0] : vector<16x128xf32> to vector<128xf32>
    %31 = vector.shape_cast %30 : vector<128xf32> to vector<1x128xf32>
    %cst_25 = arith.constant 1.600000e+01 : f32
    %32 = vector.broadcast %cst_25 : f32 to vector<1x128xf32>
    %33 = arith.divf %31, %32 : vector<1x128xf32>
    %34 = vector.broadcast %33 : vector<1x128xf32> to vector<16x128xf32>
    %35 = arith.subf %29, %34 : vector<16x128xf32>
    %36 = arith.mulf %35, %35 : vector<16x128xf32>
    %cst_26 = arith.constant dense<0.000000e+00> : vector<128xf32>
    %37 = vector.multi_reduction <add>, %36, %cst_26 [0] : vector<16x128xf32> to vector<128xf32>
    %38 = vector.shape_cast %37 : vector<128xf32> to vector<1x128xf32>
    %cst_27 = arith.constant 1.600000e+01 : f32
    %39 = vector.broadcast %cst_27 : f32 to vector<1x128xf32>
    %40 = arith.divf %38, %39 : vector<1x128xf32>
    %41 = vector.extract_strided_slice %22 {offsets = [0, 0], sizes = [1, 128], strides = [1, 1]} : vector<3x128xf32> to vector<1x128xf32>
    %cst_28 = arith.constant 9.99999974E-6 : f32
    %42 = vector.broadcast %cst_28 : f32 to vector<1x128xf32>
    %43 = arith.addf %40, %42 : vector<1x128xf32>
    %44 = math.rsqrt %43 : vector<1x128xf32>
    %45 = arith.mulf %41, %44 : vector<1x128xf32>
    %46 = vector.broadcast %45 : vector<1x128xf32> to vector<16x128xf32>
    %47 = arith.mulf %35, %46 : vector<16x128xf32>
    %48 = vector.extract_strided_slice %23 {offsets = [0, 0], sizes = [1, 128], strides = [1, 1]} : vector<3x128xf32> to vector<1x128xf32>
    %49 = vector.broadcast %48 : vector<1x128xf32> to vector<16x128xf32>
    %50 = arith.addf %47, %49 : vector<16x128xf32>
    %cst_29 = arith.constant 0.000000e+00 : f32
    %51 = vector.broadcast %cst_29 : f32 to vector<16x128xf32>
    %52 = arith.cmpf ogt, %50, %51 : vector<16x128xf32>
    %53 = math.exp %50 : vector<16x128xf32>
    %cst_30 = arith.constant 1.000000e+00 : f32
    %54 = vector.broadcast %cst_30 : f32 to vector<16x128xf32>
    %55 = arith.subf %53, %54 : vector<16x128xf32>
    %56 = arith.select %52, %50, %55 : vector<16x128xi1>, vector<16x128xf32>
    %c1 = arith.constant 1 : index
    %c0_31 = arith.constant 0 : index
    %c0_32 = arith.constant 0 : index
    %57 = vector.load %arg5[%c1, %c0_31, %c0_32] : memref<3x128x128xf32, #tpu.memory_space<vmem>>, vector<1x128x128xf32>
    %58 = vector.shape_cast %57 : vector<1x128x128xf32> to vector<128x128xf32>
    %cst_33 = arith.constant dense<0.000000e+00> : vector<16x128xf32>
    %59 = tpu.matmul %56, %58, %cst_33 {dimension_numbers = #tpu.dot_dimension_numbers<[1], [0], [0], [1], [0, 0, 1, 1], [], []>} : vector<16x128xf32>, vector<128x128xf32>, vector<16x128xf32> -> vector<16x128xf32>
    %60 = vector.extract_strided_slice %21 {offsets = [1, 0], sizes = [1, 128], strides = [1, 1]} : vector<3x128xf32> to vector<1x128xf32>
    %61 = vector.broadcast %60 : vector<1x128xf32> to vector<16x128xf32>
    %62 = arith.addf %59, %61 : vector<16x128xf32>
    %cst_34 = arith.constant dense<0.000000e+00> : vector<128xf32>
    %63 = vector.multi_reduction <add>, %62, %cst_34 [0] : vector<16x128xf32> to vector<128xf32>
    %64 = vector.shape_cast %63 : vector<128xf32> to vector<1x128xf32>
    %cst_35 = arith.constant 1.600000e+01 : f32
    %65 = vector.broadcast %cst_35 : f32 to vector<1x128xf32>
    %66 = arith.divf %64, %65 : vector<1x128xf32>
    %67 = vector.broadcast %66 : vector<1x128xf32> to vector<16x128xf32>
    %68 = arith.subf %62, %67 : vector<16x128xf32>
    %69 = arith.mulf %68, %68 : vector<16x128xf32>
    %cst_36 = arith.constant dense<0.000000e+00> : vector<128xf32>
    %70 = vector.multi_reduction <add>, %69, %cst_36 [0] : vector<16x128xf32> to vector<128xf32>
    %71 = vector.shape_cast %70 : vector<128xf32> to vector<1x128xf32>
    %cst_37 = arith.constant 1.600000e+01 : f32
    %72 = vector.broadcast %cst_37 : f32 to vector<1x128xf32>
    %73 = arith.divf %71, %72 : vector<1x128xf32>
    %74 = vector.extract_strided_slice %22 {offsets = [1, 0], sizes = [1, 128], strides = [1, 1]} : vector<3x128xf32> to vector<1x128xf32>
    %cst_38 = arith.constant 9.99999974E-6 : f32
    %75 = vector.broadcast %cst_38 : f32 to vector<1x128xf32>
    %76 = arith.addf %73, %75 : vector<1x128xf32>
    %77 = math.rsqrt %76 : vector<1x128xf32>
    %78 = arith.mulf %74, %77 : vector<1x128xf32>
    %79 = vector.broadcast %78 : vector<1x128xf32> to vector<16x128xf32>
    %80 = arith.mulf %68, %79 : vector<16x128xf32>
    %81 = vector.extract_strided_slice %23 {offsets = [1, 0], sizes = [1, 128], strides = [1, 1]} : vector<3x128xf32> to vector<1x128xf32>
    %82 = vector.broadcast %81 : vector<1x128xf32> to vector<16x128xf32>
    %83 = arith.addf %80, %82 : vector<16x128xf32>
    %cst_39 = arith.constant 0.000000e+00 : f32
    %84 = vector.broadcast %cst_39 : f32 to vector<16x128xf32>
    %85 = arith.cmpf ogt, %83, %84 : vector<16x128xf32>
    %86 = math.exp %83 : vector<16x128xf32>
    %cst_40 = arith.constant 1.000000e+00 : f32
    %87 = vector.broadcast %cst_40 : f32 to vector<16x128xf32>
    %88 = arith.subf %86, %87 : vector<16x128xf32>
    %89 = arith.select %85, %83, %88 : vector<16x128xi1>, vector<16x128xf32>
    %c2 = arith.constant 2 : index
    %c0_41 = arith.constant 0 : index
    %c0_42 = arith.constant 0 : index
    %90 = vector.load %arg5[%c2, %c0_41, %c0_42] : memref<3x128x128xf32, #tpu.memory_space<vmem>>, vector<1x128x128xf32>
    %91 = vector.shape_cast %90 : vector<1x128x128xf32> to vector<128x128xf32>
    %cst_43 = arith.constant dense<0.000000e+00> : vector<16x128xf32>
    %92 = tpu.matmul %89, %91, %cst_43 {dimension_numbers = #tpu.dot_dimension_numbers<[1], [0], [0], [1], [0, 0, 1, 1], [], []>} : vector<16x128xf32>, vector<128x128xf32>, vector<16x128xf32> -> vector<16x128xf32>
    %93 = vector.extract_strided_slice %21 {offsets = [2, 0], sizes = [1, 128], strides = [1, 1]} : vector<3x128xf32> to vector<1x128xf32>
    %94 = vector.broadcast %93 : vector<1x128xf32> to vector<16x128xf32>
    %95 = arith.addf %92, %94 : vector<16x128xf32>
    %cst_44 = arith.constant dense<0.000000e+00> : vector<128xf32>
    %96 = vector.multi_reduction <add>, %95, %cst_44 [0] : vector<16x128xf32> to vector<128xf32>
    %97 = vector.shape_cast %96 : vector<128xf32> to vector<1x128xf32>
    %cst_45 = arith.constant 1.600000e+01 : f32
    %98 = vector.broadcast %cst_45 : f32 to vector<1x128xf32>
    %99 = arith.divf %97, %98 : vector<1x128xf32>
    %100 = vector.broadcast %99 : vector<1x128xf32> to vector<16x128xf32>
    %101 = arith.subf %95, %100 : vector<16x128xf32>
    %102 = arith.mulf %101, %101 : vector<16x128xf32>
    %cst_46 = arith.constant dense<0.000000e+00> : vector<128xf32>
    %103 = vector.multi_reduction <add>, %102, %cst_46 [0] : vector<16x128xf32> to vector<128xf32>
    %104 = vector.shape_cast %103 : vector<128xf32> to vector<1x128xf32>
    %cst_47 = arith.constant 1.600000e+01 : f32
    %105 = vector.broadcast %cst_47 : f32 to vector<1x128xf32>
    %106 = arith.divf %104, %105 : vector<1x128xf32>
    %107 = vector.extract_strided_slice %22 {offsets = [2, 0], sizes = [1, 128], strides = [1, 1]} : vector<3x128xf32> to vector<1x128xf32>
    %cst_48 = arith.constant 9.99999974E-6 : f32
    %108 = vector.broadcast %cst_48 : f32 to vector<1x128xf32>
    %109 = arith.addf %106, %108 : vector<1x128xf32>
    %110 = math.rsqrt %109 : vector<1x128xf32>
    %111 = arith.mulf %107, %110 : vector<1x128xf32>
    %112 = vector.broadcast %111 : vector<1x128xf32> to vector<16x128xf32>
    %113 = arith.mulf %101, %112 : vector<16x128xf32>
    %114 = vector.extract_strided_slice %23 {offsets = [2, 0], sizes = [1, 128], strides = [1, 1]} : vector<3x128xf32> to vector<1x128xf32>
    %115 = vector.broadcast %114 : vector<1x128xf32> to vector<16x128xf32>
    %116 = arith.addf %113, %115 : vector<16x128xf32>
    %c0_49 = arith.constant 0 : index
    %c0_50 = arith.constant 0 : index
    %117 = vector.load %arg14[%c0_49, %c0_50] : memref<16x128xf32, #tpu.memory_space<vmem>>, vector<16x128xf32>
    %118 = arith.addf %116, %117 : vector<16x128xf32>
    %cst_51 = arith.constant 0.000000e+00 : f32
    %119 = vector.broadcast %cst_51 : f32 to vector<16x128xf32>
    %120 = arith.cmpf ogt, %118, %119 : vector<16x128xf32>
    %121 = math.exp %118 : vector<16x128xf32>
    %cst_52 = arith.constant 1.000000e+00 : f32
    %122 = vector.broadcast %cst_52 : f32 to vector<16x128xf32>
    %123 = arith.subf %121, %122 : vector<16x128xf32>
    %124 = arith.select %120, %118, %123 : vector<16x128xi1>, vector<16x128xf32>
    %c0_53 = arith.constant 0 : index
    %c0_54 = arith.constant 0 : index
    %125 = vector.load %arg9[%c0_53, %c0_54] : memref<128x128xf32, #tpu.memory_space<vmem>>, vector<128x128xf32>
    %cst_55 = arith.constant dense<0.000000e+00> : vector<16x128xf32>
    %126 = tpu.matmul %124, %125, %cst_55 {dimension_numbers = #tpu.dot_dimension_numbers<[1], [0], [0], [1], [0, 0, 1, 1], [], []>} : vector<16x128xf32>, vector<128x128xf32>, vector<16x128xf32> -> vector<16x128xf32>
    %c0_56 = arith.constant 0 : index
    %c0_57 = arith.constant 0 : index
    %127 = vector.load %arg10[%c0_56, %c0_57] : memref<1x128xf32, #tpu.memory_space<vmem>>, vector<1x128xf32>
    %128 = vector.broadcast %127 : vector<1x128xf32> to vector<16x128xf32>
    %129 = arith.addf %126, %128 : vector<16x128xf32>
    %130 = vector.shape_cast %129 : vector<16x128xf32> to vector<1x16x128xf32>
    %cst_58 = arith.constant dense<0.000000e+00> : vector<1xf32>
    %131 = vector.multi_reduction <add>, %130, %cst_58 [1, 2] : vector<1x16x128xf32> to vector<1xf32>
    %132 = vector.shape_cast %131 : vector<1xf32> to vector<1x1x1xf32>
    %133 = vector.extract %132[0, 0, 0] : f32 from vector<1x1x1xf32>
    %134 = vector.broadcast %133 : f32 to vector<1x1xf32>
    %135 = arith.mulf %129, %129 : vector<16x128xf32>
    %136 = vector.shape_cast %135 : vector<16x128xf32> to vector<1x16x128xf32>
    %cst_59 = arith.constant dense<0.000000e+00> : vector<1xf32>
    %137 = vector.multi_reduction <add>, %136, %cst_59 [1, 2] : vector<1x16x128xf32> to vector<1xf32>
    %138 = vector.shape_cast %137 : vector<1xf32> to vector<1x1x1xf32>
    %139 = vector.extract %138[0, 0, 0] : f32 from vector<1x1x1xf32>
    %140 = vector.broadcast %139 : f32 to vector<1x1xf32>
    %cst_60 = arith.constant 3.906250e-03 : f32
    %141 = vector.broadcast %cst_60 : f32 to vector<1x1xf32>
    %142 = arith.mulf %134, %141 : vector<1x1xf32>
    %cst_61 = arith.constant 3.906250e-03 : f32
    %143 = vector.broadcast %cst_61 : f32 to vector<1x1xf32>
    %144 = arith.mulf %140, %143 : vector<1x1xf32>
    %145 = arith.mulf %142, %142 : vector<1x1xf32>
    %146 = arith.subf %144, %145 : vector<1x1xf32>
    %c0_62 = arith.constant 0 : index
    %c0_63 = arith.constant 0 : index
    %147 = memref.load %arg11[%c0_62, %c0_63] : memref<1x1xf32, #tpu.memory_space<smem>>
    %c0_64 = arith.constant 0 : index
    %c0_65 = arith.constant 0 : index
    %148 = memref.load %arg12[%c0_64, %c0_65] : memref<1x1xf32, #tpu.memory_space<smem>>
    %cst_66 = arith.constant 1.000000e-03 : f32
    %149 = vector.broadcast %cst_66 : f32 to vector<1x1xf32>
    %150 = arith.addf %146, %149 : vector<1x1xf32>
    %151 = math.rsqrt %150 : vector<1x1xf32>
    %152 = vector.broadcast %147 : f32 to vector<1x1xf32>
    %153 = arith.mulf %152, %151 : vector<1x1xf32>
    %154 = arith.mulf %142, %153 : vector<1x1xf32>
    %155 = vector.broadcast %148 : f32 to vector<1x1xf32>
    %156 = arith.subf %155, %154 : vector<1x1xf32>
    %157 = vector.broadcast %153 : vector<1x1xf32> to vector<16x128xf32>
    %158 = arith.mulf %129, %157 : vector<16x128xf32>
    %159 = vector.broadcast %156 : vector<1x1xf32> to vector<16x128xf32>
    %160 = arith.addf %158, %159 : vector<16x128xf32>
    %c0_67 = arith.constant 0 : index
    %c0_68 = arith.constant 0 : index
    %161 = vector.load %arg13[%c0_67, %c0_68] : memref<16x128xf32, #tpu.memory_space<vmem>>, vector<16x128xf32>
    tpu.vector_store %arg13[%c0_67, %c0_68], %160 {strides = array<i32>} : memref<16x128xf32, #tpu.memory_space<vmem>>, vector<16x128xf32>,
    return
  }
}

</mosaic_0001>

<llo_original>
// kernel: latent_decoder_forward.1
$region0: #{latent_decoder_forward.1}
  #allocation0 [shape = 'u32[]', space=smem, size = 0x4, offset = 0x4, fixed_abs, tag = 'smem constant byte address 0x4 - core index']
  #allocation1 [shape = 'u32[144,128]{1,0:T(1,128)}', space=vmem, size = 0x12000, scoped, tag = 'internal scratch']
  #allocation2 [shape = 'f32[16,128]{1,0:T(8,128)}', space=vmem, size = 0x2000, scoped, tag = 'scratch operand']
  #allocation3 [shape = 'f32[1,1]{1,0:T(1,128)S(6)}', space=smem, size = 0x200, scoped, tag = 'scoped memory for latent_decoder_forward.1']
  #allocation4 [shape = 'f32[1,1]{1,0:T(1,128)S(6)}', space=smem, size = 0x200, scoped, tag = 'scoped memory for latent_decoder_forward.1']
  %s0 = inlined_call_operand.vmem [shape: f32[16,128], index: 0, kind: input, shape index: {}]
  %s1 = inlined_call_operand.vmem [shape: f32[2,128], index: 1, kind: input, shape index: {}]
  %s2 = inlined_call_operand.hbm [shape: f32[128,128], index: 2, kind: input, shape index: {}]
  %s3 = inlined_call_operand.hbm [shape: f32[128,128], index: 3, kind: input, shape index: {}]
  %s4 = inlined_call_operand.vmem [shape: f32[1,128], index: 4, kind: input, shape index: {}]
  %s5 = inlined_call_operand.hbm [shape: f32[3,128,128], index: 5, kind: input, shape index: {}]
  %s6 = inlined_call_operand.vmem [shape: f32[3,128], index: 6, kind: input, shape index: {}]
  %s7 = inlined_call_operand.vmem [shape: f32[3,128], index: 7, kind: input, shape index: {}]
  %s8 = inlined_call_operand.vmem [shape: f32[3,128], index: 8, kind: input, shape index: {}]
  %s9 = inlined_call_operand.hbm [shape: f32[128,128], index: 9, kind: input, shape index: {}]
  %s10 = inlined_call_operand.vmem [shape: f32[1,128], index: 10, kind: input, shape index: {}]
  %s11 = inlined_call_operand.<no memory space> [shape: f32[1,1], index: 11, kind: input, shape index: {}]
  %s12 = inlined_call_operand.<no memory space> [shape: f32[1,1], index: 12, kind: input, shape index: {}]
  %s13 = inlined_call_operand.vmem [shape: f32[16,128], index: 13, kind: output, shape index: {}]
  %s14 = sld [smem:[#allocation0]]
  $region78: #{latent_decoder_forward.1} parent=0
    _
  %s16 = ssub.s32 1, %s14
  %s17 = scalar_select 0, %s16, %s14
  %18 = sst [smem:[#allocation3]] %s11
  %19 = sst [smem:[#allocation4]] %s12
  $region1: #{latent_decoder_forward.1} parent=0
    #allocation5 [shape = 'u8[65536]{0}', space=vmem, size = 0x10000, scoped, tag = 'input window, operand 2, single buffered']
    #allocation6 [shape = 's32[1]{0}', space=sflag, size = 0x4, scoped, tag = 'scoped memory for latent_decoder_forward.1']
    #allocation7 [shape = 'u8[65536]{0}', space=vmem, size = 0x10000, scoped, tag = 'input window, operand 3, single buffered']
    #allocation8 [shape = 's32[1]{0}', space=sflag, size = 0x4, scoped, tag = 'scoped memory for latent_decoder_forward.1']
    #allocation9 [shape = 'u8[196608]{0}', space=vmem, size = 0x30000, scoped, tag = 'input window, operand 5, single buffered']
    #allocation10 [shape = 'u8[65536]{0}', space=vmem, size = 0x10000, scoped, tag = 'input window, operand 9, single buffered']
    #allocation11 [shape = 's32[1]{0}', space=sflag, size = 0x4, scoped, tag = 'scoped memory for latent_decoder_forward.1']
    %20 = vsyncpa [#allocation6], 0
    %21 = vsyncpa [#allocation8], 0
    %22 = vsyncpa [#allocation11], 0
    // Predicated region
    $region2: #{latent_decoder_forward.1} parent=1 // pred_check
      _
    $region3: #{latent_decoder_forward.1} parent=1 // pred_check_branch
      %24 = sbr.rel (0) target = $region5
    $region4: #{latent_decoder_forward.1} parent=1 // pred_region
      _
    $region5: #{latent_decoder_forward.1} parent=1 // pred_fallthru
      _
    // Predicated region
    $region6: #{latent_decoder_forward.1} parent=1 // pred_check
      _
    $region7: #{latent_decoder_forward.1} parent=1 // pred_check_branch
      %26 = sbr.rel (0) target = $region9
    $region8: #{latent_decoder_forward.1} parent=1 // pred_region
      _
    $region9: #{latent_decoder_forward.1} parent=1 // pred_fallthru
      _
    // Predicated region
    $region10: #{latent_decoder_forward.1} parent=1 // pred_check
      _
    $region11: #{latent_decoder_forward.1} parent=1 // pred_check_branch
      %28 = sbr.rel (0) target = $region13
    $region12: #{latent_decoder_forward.1} parent=1 // pred_region
      %s30 = ssub.s32 2048, 2048
      %31 = vsyncadd [#allocation6], %s30
      %s32 = sshll.u32 [#allocation5], 4
      %s33 = int_to_ptr.vmem [resolvable:$true] %s32
      %38 = dma.hbm_to_vmem [thread:$0]  %s2, 2048, %s33, [#allocation6], 128, 128, 8
    $region13: #{latent_decoder_forward.1} parent=1 // pred_fallthru
      _
    // Predicated region
    $region14: #{latent_decoder_forward.1} parent=1 // pred_check
      _
    $region15: #{latent_decoder_forward.1} parent=1 // pred_check_branch
      %40 = sbr.rel (0) target = $region17
    $region16: #{latent_decoder_forward.1} parent=1 // pred_region
      %s42 = ssub.s32 2048, 2048
      %43 = vsyncadd [#allocation8], %s42
      %s44 = sshll.u32 [#allocation7], 4
      %s45 = int_to_ptr.vmem [resolvable:$true] %s44
      %50 = dma.hbm_to_vmem [thread:$0]  %s3, 2048, %s45, [#allocation8], 128, 128, 8
    $region17: #{latent_decoder_forward.1} parent=1 // pred_fallthru
      _
    // Predicated region
    $region18: #{latent_decoder_forward.1} parent=1 // pred_check
      _
    $region19: #{latent_decoder_forward.1} parent=1 // pred_check_branch
      %52 = sbr.rel (0) target = $region21
    $region20: #{latent_decoder_forward.1} parent=1 // pred_region
      _
    $region21: #{latent_decoder_forward.1} parent=1 // pred_fallthru
      _
    // Predicated region
    $region22: #{latent_decoder_forward.1} parent=1 // pred_check
      _
    $region23: #{latent_decoder_forward.1} parent=1 // pred_check_branch
      %54 = sbr.rel (0) target = $region25
    $region24: #{latent_decoder_forward.1} parent=1 // pred_region
      %s56 = ssub.s32 6144, 6144
      %57 = vsyncadd [#allocation8], %s56
      %s58 = sshll.u32 [#allocation9], 4
      %s59 = int_to_ptr.vmem [resolvable:$true] %s58
      %64 = dma.hbm_to_vmem [thread:$0]  %s5, 6144, %s59, [#allocation8], 128, 128, 8
    $region25: #{latent_decoder_forward.1} parent=1 // pred_fallthru
      _
    // Predicated region
    $region26: #{latent_decoder_forward.1} parent=1 // pred_check
      _
    $region27: #{latent_decoder_forward.1} parent=1 // pred_check_branch
      %66 = sbr.rel (0) target = $region29
    $region28: #{latent_decoder_forward.1} parent=1 // pred_region
      _
    $region29: #{latent_decoder_forward.1} parent=1 // pred_fallthru
      _
    // Predicated region
    $region30: #{latent_decoder_forward.1} parent=1 // pred_check
      _
    $region31: #{latent_decoder_forward.1} parent=1 // pred_check_branch
      %68 = sbr.rel (0) target = $region33
    $region32: #{latent_decoder_forward.1} parent=1 // pred_region
      _
    $region33: #{latent_decoder_forward.1} parent=1 // pred_fallthru
      _
    // Predicated region
    $region34: #{latent_decoder_forward.1} parent=1 // pred_check
      _
    $region35: #{latent_decoder_forward.1} parent=1 // pred_check_branch
      %70 = sbr.rel (0) target = $region37
    $region36: #{latent_decoder_forward.1} parent=1 // pred_region
      _
    $region37: #{latent_decoder_forward.1} parent=1 // pred_fallthru
      _
    // Predicated region
    $region38: #{latent_decoder_forward.1} parent=1 // pred_check
      _
    $region39: #{latent_decoder_forward.1} parent=1 // pred_check_branch
      %72 = sbr.rel (0) target = $region41
    $region40: #{latent_decoder_forward.1} parent=1 // pred_region
      %s74 = ssub.s32 2048, 2048
      %75 = vsyncadd [#allocation11], %s74
      %s76 = sshll.u32 [#allocation10], 4
      %s77 = int_to_ptr.vmem [resolvable:$true] %s76
      %82 = dma.hbm_to_vmem [thread:$0]  %s9, 2048, %s77, [#allocation11], 128, 128, 8
    $region41: #{latent_decoder_forward.1} parent=1 // pred_fallthru
      _
    // Predicated region
    $region42: #{latent_decoder_forward.1} parent=1 // pred_check
      _
    $region43: #{latent_decoder_forward.1} parent=1 // pred_check_branch
      %84 = sbr.rel (0) target = $region45
    $region44: #{latent_decoder_forward.1} parent=1 // pred_region
      _
    $region45: #{latent_decoder_forward.1} parent=1 // pred_fallthru
      _
    // Predicated region
    $region46: #{latent_decoder_forward.1} parent=1 // pred_check
      _
    $region47: #{latent_decoder_forward.1} parent=1 // pred_check_branch
      %86 = sbr.rel (0) target = $region49
    $region48: #{latent_decoder_forward.1} parent=1 // pred_region
      _
    $region49: #{latent_decoder_forward.1} parent=1 // pred_fallthru
      _
    // Predicated region
    $region50: #{latent_decoder_forward.1} parent=1 // pred_check
      _
    $region51: #{latent_decoder_forward.1} parent=1 // pred_check_branch
      %88 = sbr.rel (0) target = $region53
    $region52: #{latent_decoder_forward.1} parent=1 // pred_region
      _
    $region53: #{latent_decoder_forward.1} parent=1 // pred_fallthru
      _
    // Predicated region
    $region54: #{latent_decoder_forward.1} parent=1 // pred_check
      _
    $region55: #{latent_decoder_forward.1} parent=1 // pred_check_branch
      %90 = sbr.rel (0) target = $region57
    $region56: #{latent_decoder_forward.1} parent=1 // pred_region
      %91 = dma.done [#allocation6], 2048
    $region57: #{latent_decoder_forward.1} parent=1 // pred_fallthru
      _
    // Predicated region
    $region58: #{latent_decoder_forward.1} parent=1 // pred_check
      _
    $region59: #{latent_decoder_forward.1} parent=1 // pred_check_branch
      %93 = sbr.rel (0) target = $region61
    $region60: #{latent_decoder_forward.1} parent=1 // pred_region
      %94 = dma.done [#allocation8], 2048
    $region61: #{latent_decoder_forward.1} parent=1 // pred_fallthru
      _
    // Predicated region
    $region62: #{latent_decoder_forward.1} parent=1 // pred_check
      _
    $region63: #{latent_decoder_forward.1} parent=1 // pred_check_branch
      %96 = sbr.rel (0) target = $region65
    $region64: #{latent_decoder_forward.1} parent=1 // pred_region
      %97 = dma.done [#allocation8], 6144
    $region65: #{latent_decoder_forward.1} parent=1 // pred_fallthru
      _
    // Predicated region
    $region66: #{latent_decoder_forward.1} parent=1 // pred_check
      _
    $region67: #{latent_decoder_forward.1} parent=1 // pred_check_branch
      %99 = sbr.rel (0) target = $region69
    $region68: #{latent_decoder_forward.1} parent=1 // pred_region
      %100 = dma.done [#allocation11], 2048
    $region69: #{latent_decoder_forward.1} parent=1 // pred_fallthru
      _
    %v101 = vld [vmem:[%s0] sm:$0xff]
    %v102 = vld [vmem:[%s0 + $0x8] sm:$0xff]
    %v103 = vld [vmem:[#allocation5] sm:$0xff]
    %v104 = vld [vmem:[#allocation5 + $0x8] sm:$0xff]
    %v105 = vld [vmem:[#allocation5 + $0x10] sm:$0xff]
    %v106 = vld [vmem:[#allocation5 + $0x18] sm:$0xff]
    %v107 = vld [vmem:[#allocation5 + $0x20] sm:$0xff]
    %v108 = vld [vmem:[#allocation5 + $0x28] sm:$0xff]
    %v109 = vld [vmem:[#allocation5 + $0x30] sm:$0xff]
    %v110 = vld [vmem:[#allocation5 + $0x38] sm:$0xff]
    %v111 = vld [vmem:[#allocation5 + $0x40] sm:$0xff]
    %v112 = vld [vmem:[#allocation5 + $0x48] sm:$0xff]
    %v113 = vld [vmem:[#allocation5 + $0x50] sm:$0xff]
    %v114 = vld [vmem:[#allocation5 + $0x58] sm:$0xff]
    %v115 = vld [vmem:[#allocation5 + $0x60] sm:$0xff]
    %v116 = vld [vmem:[#allocation5 + $0x68] sm:$0xff]
    %v117 = vld [vmem:[#allocation5 + $0x70] sm:$0xff]
    %v118 = vld [vmem:[#allocation5 + $0x78] sm:$0xff]
    %v119 = vld [vmem:[%s1] sm:$0x3]
    %v120 = vld [vmem:[#allocation7] sm:$0xff]
    %v121 = vld [vmem:[#allocation7 + $0x8] sm:$0xff]
    %v122 = vld [vmem:[#allocation7 + $0x10] sm:$0xff]
    %v123 = vld [vmem:[#allocation7 + $0x18] sm:$0xff]
    %v124 = vld [vmem:[#allocation7 + $0x20] sm:$0xff]
    %v125 = vld [vmem:[#allocation7 + $0x28] sm:$0xff]
    %v126 = vld [vmem:[#allocation7 + $0x30] sm:$0xff]
    %v127 = vld [vmem:[#allocation7 + $0x38] sm:$0xff]
    %v128 = vld [vmem:[#allocation7 + $0x40] sm:$0xff]
    %v129 = vld [vmem:[#allocation7 + $0x48] sm:$0xff]
    %v130 = vld [vmem:[#allocation7 + $0x50] sm:$0xff]
    %v131 = vld [vmem:[#allocation7 + $0x58] sm:$0xff]
    %v132 = vld [vmem:[#allocation7 + $0x60] sm:$0xff]
    %v133 = vld [vmem:[#allocation7 + $0x68] sm:$0xff]
    %v134 = vld [vmem:[#allocation7 + $0x70] sm:$0xff]
    %v135 = vld [vmem:[#allocation7 + $0x78] sm:$0xff]
    %136 = vmatprep.subr.mxu0 0.0
    %137 = vmatpush1.msra.mxu0 %v120
    %138 = vmatprep.subr.mxu0 0.0
    %139 = vmatpush1.msra.mxu0 %v121
    %140 = vmatprep.subr.mxu0 0.0
    %141 = vmatpush1.msra.mxu0 %v122
    %142 = vmatprep.subr.mxu0 0.0
    %143 = vmatpush1.msra.mxu0 %v123
    %144 = vmatprep.subr.mxu0 0.0
    %145 = vmatpush1.msra.mxu0 %v124
    %146 = vmatprep.subr.mxu0 0.0
    %147 = vmatpush1.msra.mxu0 %v125
    %148 = vmatprep.subr.mxu0 0.0
    %149 = vmatpush1.msra.mxu0 %v126
    %150 = vmatprep.subr.mxu0 0.0
    %151 = vmatpush1.msra.mxu0 %v127
    %152 = vmatprep.subr.mxu0 0.0
    %153 = vmatpush1.msra.mxu0 %v128
    %154 = vmatprep.subr.mxu0 0.0
    %155 = vmatpush1.msra.mxu0 %v129
    %156 = vmatprep.subr.mxu0 0.0
    %157 = vmatpush1.msra.mxu0 %v130
    %158 = vmatprep.subr.mxu0 0.0
    %159 = vmatpush1.msra.mxu0 %v131
    %160 = vmatprep.subr.mxu0 0.0
    %161 = vmatpush1.msra.mxu0 %v132
    %162 = vmatprep.subr.mxu0 0.0
    %163 = vmatpush1.msra.mxu0 %v133
    %164 = vmatprep.subr.mxu0 0.0
    %165 = vmatpush1.msra.mxu0 %v134
    %166 = vmatprep.subr.mxu0 0.0
    %167 = vmatpush1.msra.mxu0 %v135
    %168 = vmatprep.subr.mxu0 0.0
    %169 = vmatpush1.msra.mxu0 0.0
    %170 = vmatprep.subr.mxu0 0.0
    %171 = vmatpush1.msra.mxu0 0.0
    %172 = vmatprep.subr.mxu0 0.0
    %173 = vmatpush1.msra.mxu0 0.0
    %174 = vmatprep.subr.mxu0 0.0
    %175 = vmatpush1.msra.mxu0 0.0
    %176 = vmatprep.subr.mxu0 0.0
    %177 = vmatpush1.msra.mxu0 0.0
    %178 = vmatprep.subr.mxu0 0.0
    %179 = vmatpush1.msra.mxu0 0.0
    %180 = vmatprep.subr.mxu0 0.0
    %181 = vmatpush1.msra.mxu0 0.0
    %182 = vmatprep.subr.mxu0 0.0
    %183 = vmatpush1.msra.mxu0 0.0
    %184 = vmatprep.subr.mxu0 0.0
    %185 = vmatpush1.msra.mxu0 0.0
    %186 = vmatprep.subr.mxu0 0.0
    %187 = vmatpush1.msra.mxu0 0.0
    %188 = vmatprep.subr.mxu0 0.0
    %189 = vmatpush1.msra.mxu0 0.0
    %190 = vmatprep.subr.mxu0 0.0
    %191 = vmatpush1.msra.mxu0 0.0
    %192 = vmatprep.subr.mxu0 0.0
    %193 = vmatpush1.msra.mxu0 0.0
    %194 = vmatprep.subr.mxu0 0.0
    %195 = vmatpush1.msra.mxu0 0.0
    %196 = vmatprep.subr.mxu0 0.0
    %197 = vmatpush1.msra.mxu0 0.0
    %198 = vmatprep.subr.mxu0 0.0
    %199 = vmatpush1.msra.mxu0 0.0
    %200 = vmatprep.mubr.f32.mxu0 0.0
    %201 = vmatmul.mubr.f32.gmra.mrb[0].mxu0 %v119
    %v202 = vpop.f32.mrb[0].mxu0
    %v203 = vadd.f32 0.0, %v202
    %v204 = vpop.f32.mrb[0].mxu0
    %205 = vdwg.mxu0
    %v208 = vunpack.c.l.s4 1966171168
    %v209 = vunpack.c.0.s8 %v208
    %v210 = vlaneseq
    %v211 = vshrl.u32 %v210, 7
    %v212 = vsub.s32 %v209, %v211
    %v213 = vrot.slane %v203, %v212
    %v214 = vcombine.high %v213, %v213
    %v216 = vunpack.c.l.s4 1966171168
    %v217 = vunpack.c.0.s8 %v216
    %v218 = vlaneseq
    %v219 = vshrl.u32 %v218, 7
    %v220 = vsub.s32 %v217, %v219
    %v221 = vrot.slane %v213, %v220
    %v223 = vunpack.c.l.s4 1966171168
    %v224 = vunpack.c.0.s8 %v223
    %v225 = vlaneseq
    %v226 = vshrl.u32 %v225, 7
    %v227 = vsub.s32 %v224, %v226
    %v228 = vrot.slane %v214, %v227
    %v229 = vlaneseq
    %v230 = vshrl.u32 %v229, 7
    %v231 = vsub.s32 0, %v230
    %v232 = vrot.slane %v221, %v231
    %v233 = vlaneseq
    %v234 = vshrl.u32 %v233, 7
    %v235 = vsub.s32 0, %v234
    %v236 = vrot.slane %v228, %v235
    %239 = vmatprep.subr.mxu0 0.0
    %240 = vmatpush1.msra.mxu0 %v103
    %241 = vmatprep.subr.mxu0 0.0
    %242 = vmatpush1.msra.mxu0 %v104
    %243 = vmatprep.subr.mxu0 0.0
    %244 = vmatpush1.msra.mxu0 %v105
    %245 = vmatprep.subr.mxu0 0.0
    %246 = vmatpush1.msra.mxu0 %v106
    %247 = vmatprep.subr.mxu0 0.0
    %248 = vmatpush1.msra.mxu0 %v107
    %249 = vmatprep.subr.mxu0 0.0
    %250 = vmatpush1.msra.mxu0 %v108
    %251 = vmatprep.subr.mxu0 0.0
    %252 = vmatpush1.msra.mxu0 %v109
    %253 = vmatprep.subr.mxu0 0.0
    %254 = vmatpush1.msra.mxu0 %v110
    %255 = vmatprep.subr.mxu0 0.0
    %256 = vmatpush1.msra.mxu0 %v111
    %257 = vmatprep.subr.mxu0 0.0
    %258 = vmatpush1.msra.mxu0 %v112
    %259 = vmatprep.subr.mxu0 0.0
    %260 = vmatpush1.msra.mxu0 %v113
    %261 = vmatprep.subr.mxu0 0.0
    %262 = vmatpush1.msra.mxu0 %v114
    %263 = vmatprep.subr.mxu0 0.0
    %264 = vmatpush1.msra.mxu0 %v115
    %265 = vmatprep.subr.mxu0 0.0
    %266 = vmatpush1.msra.mxu0 %v116
    %267 = vmatprep.subr.mxu0 0.0
    %268 = vmatpush1.msra.mxu0 %v117
    %269 = vmatprep.subr.mxu0 0.0
    %270 = vmatpush1.msra.mxu0 %v118
    %271 = vmatprep.subr.mxu0 0.0
    %272 = vmatpush1.msra.mxu0 0.0
    %273 = vmatprep.subr.mxu0 0.0
    %274 = vmatpush1.msra.mxu0 0.0
    %275 = vmatprep.subr.mxu0 0.0
    %276 = vmatpush1.msra.mxu0 0.0
    %277 = vmatprep.subr.mxu0 0.0
    %278 = vmatpush1.msra.mxu0 0.0
    %279 = vmatprep.subr.mxu0 0.0
    %280 = vmatpush1.msra.mxu0 0.0
    %281 = vmatprep.subr.mxu0 0.0
    %282 = vmatpush1.msra.mxu0 0.0
    %283 = vmatprep.subr.mxu0 0.0
    %284 = vmatpush1.msra.mxu0 0.0
    %285 = vmatprep.subr.mxu0 0.0
    %286 = vmatpush1.msra.mxu0 0.0
    %287 = vmatprep.subr.mxu0 0.0
    %288 = vmatpush1.msra.mxu0 0.0
    %289 = vmatprep.subr.mxu0 0.0
    %290 = vmatpush1.msra.mxu0 0.0
    %291 = vmatprep.subr.mxu0 0.0
    %292 = vmatpush1.msra.mxu0 0.0
    %293 = vmatprep.subr.mxu0 0.0
    %294 = vmatpush1.msra.mxu0 0.0
    %295 = vmatprep.subr.mxu0 0.0
    %296 = vmatpush1.msra.mxu0 0.0
    %297 = vmatprep.subr.mxu0 0.0
    %298 = vmatpush1.msra.mxu0 0.0
    %299 = vmatprep.subr.mxu0 0.0
    %300 = vmatpush1.msra.mxu0 0.0
    %301 = vmatprep.subr.mxu0 0.0
    %302 = vmatpush1.msra.mxu0 0.0
    %303 = vmatprep.mubr.f32.mxu0 0.0
    %304 = vmatmul.mubr.f32.gmra.mrb[0].mxu0 %v101
    %v305 = vpop.f32.mrb[0].mxu0
    %v306 = vadd.f32 %v232, %v305
    %v307 = vpop.f32.mrb[0].mxu0
    %308 = vmatprep.mubr.f32.mxu0 0.0
    %309 = vmatmul.mubr.f32.gmra.mrb[0].mxu0 %v102
    %v310 = vpop.f32.mrb[0].mxu0
    %v311 = vadd.f32 %v236, %v310
    %v312 = vpop.f32.mrb[0].mxu0
    %313 = vdwg.mxu0
    %v314 = vld [vmem:[%s4] sm:$0x1]
    %v316 = vlaneseq
    %v317 = vshrl.u32 %v316, 7
    %v318 = vsub.s32 0, %v317
    %v319 = vrot.slane %v314, %v318
    %v321 = vadd.f32 %v306, %v319
    %v322 = vadd.f32 %v311, %v319
    %vm323 = vcmp.gt.f32.partialorder %v321, 0.0
    %vm324 = vcmp.gt.f32.partialorder %v322, 0.0
    %v325 = vmul.f32 %v321, 1.442695
    %v326 = vpow.pop %v325
    %v327 = vmul.f32 %v322, 1.442695
    %v328 = vpow.pop %v327
    %v329 = vsub.f32 %v326, 1.0
    %v330 = vsub.f32 %v328, 1.0
    %v331 = vsel %vm323, %v321, %v329
    %v332 = vsel %vm324, %v322, %v330
    %333 = vst [vmem:[#allocation2] sm:$0xff] %v331
    %334 = vst [vmem:[#allocation2 + $0x8] sm:$0xff] %v332
    %v335 = vld [vmem:[%s6] sm:$0x7]
    %v336 = vld [vmem:[%s7] sm:$0x7]
    %v337 = vld [vmem:[%s8] sm:$0x7]
    %v338 = vld [vmem:[#allocation9] sm:$0xff]
    %v339 = vld [vmem:[#allocation9 + $0x8] sm:$0xff]
    %v340 = vld [vmem:[#allocation9 + $0x10] sm:$0xff]
    %v341 = vld [vmem:[#allocation9 + $0x18] sm:$0xff]
    %v342 = vld [vmem:[#allocation9 + $0x20] sm:$0xff]
    %v343 = vld [vmem:[#allocation9 + $0x28] sm:$0xff]
    %v344 = vld [vmem:[#allocation9 + $0x30] sm:$0xff]
    %v345 = vld [vmem:[#allocation9 + $0x38] sm:$0xff]
    %v346 = vld [vmem:[#allocation9 + $0x40] sm:$0xff]
    %v347 = vld [vmem:[#allocation9 + $0x48] sm:$0xff]
    %v348 = vld [vmem:[#allocation9 + $0x50] sm:$0xff]
    %v349 = vld [vmem:[#allocation9 + $0x58] sm:$0xff]
    %v350 = vld [vmem:[#allocation9 + $0x60] sm:$0xff]
    %v351 = vld [vmem:[#allocation9 + $0x68] sm:$0xff]
    %v352 = vld [vmem:[#allocation9 + $0x70] sm:$0xff]
    %v353 = vld [vmem:[#allocation9 + $0x78] sm:$0xff]
    %v354 = vlaneseq
    %v355 = vshrl.u32 %v354, 7
    %v356 = vsub.s32 0, %v355
    %v357 = vrot.slane %v335, %v356
    %358 = vmatprep.subr.mxu0 0.0
    %359 = vmatpush1.msra.mxu0 %v338
    %360 = vmatprep.subr.mxu0 0.0
    %361 = vmatpush1.msra.mxu0 %v339
    %362 = vmatprep.subr.mxu0 0.0
    %363 = vmatpush1.msra.mxu0 %v340
    %364 = vmatprep.subr.mxu0 0.0
    %365 = vmatpush1.msra.mxu0 %v341
    %366 = vmatprep.subr.mxu0 0.0
    %367 = vmatpush1.msra.mxu0 %v342
    %368 = vmatprep.subr.mxu0 0.0
    %369 = vmatpush1.msra.mxu0 %v343
    %370 = vmatprep.subr.mxu0 0.0
    %371 = vmatpush1.msra.mxu0 %v344
    %372 = vmatprep.subr.mxu0 0.0
    %373 = vmatpush1.msra.mxu0 %v345
    %374 = vmatprep.subr.mxu0 0.0
    %375 = vmatpush1.msra.mxu0 %v346
    %376 = vmatprep.subr.mxu0 0.0
    %377 = vmatpush1.msra.mxu0 %v347
    %378 = vmatprep.subr.mxu0 0.0
    %379 = vmatpush1.msra.mxu0 %v348
    %380 = vmatprep.subr.mxu0 0.0
    %381 = vmatpush1.msra.mxu0 %v349
    %382 = vmatprep.subr.mxu0 0.0
    %383 = vmatpush1.msra.mxu0 %v350
    %384 = vmatprep.subr.mxu0 0.0
    %385 = vmatpush1.msra.mxu0 %v351
    %386 = vmatprep.subr.mxu0 0.0
    %387 = vmatpush1.msra.mxu0 %v352
    %388 = vmatprep.subr.mxu0 0.0
    %389 = vmatpush1.msra.mxu0 %v353
    %390 = vmatprep.subr.mxu0 0.0
    %391 = vmatpush1.msra.mxu0 0.0
    %392 = vmatprep.subr.mxu0 0.0
    %393 = vmatpush1.msra.mxu0 0.0
    %394 = vmatprep.subr.mxu0 0.0
    %395 = vmatpush1.msra.mxu0 0.0
    %396 = vmatprep.subr.mxu0 0.0
    %397 = vmatpush1.msra.mxu0 0.0
    %398 = vmatprep.subr.mxu0 0.0
    %399 = vmatpush1.msra.mxu0 0.0
    %400 = vmatprep.subr.mxu0 0.0
    %401 = vmatpush1.msra.mxu0 0.0
    %402 = vmatprep.subr.mxu0 0.0
    %403 = vmatpush1.msra.mxu0 0.0
    %404 = vmatprep.subr.mxu0 0.0
    %405 = vmatpush1.msra.mxu0 0.0
    %406 = vmatprep.subr.mxu0 0.0
    %407 = vmatpush1.msra.mxu0 0.0
    %408 = vmatprep.subr.mxu0 0.0
    %409 = vmatpush1.msra.mxu0 0.0
    %410 = vmatprep.subr.mxu0 0.0
    %411 = vmatpush1.msra.mxu0 0.0
    %412 = vmatprep.subr.mxu0 0.0
    %413 = vmatpush1.msra.mxu0 0.0
    %414 = vmatprep.subr.mxu0 0.0
    %415 = vmatpush1.msra.mxu0 0.0
    %416 = vmatprep.subr.mxu0 0.0
    %417 = vmatpush1.msra.mxu0 0.0
    %418 = vmatprep.subr.mxu0 0.0
    %419 = vmatpush1.msra.mxu0 0.0
    %420 = vmatprep.subr.mxu0 0.0
    %421 = vmatpush1.msra.mxu0 0.0
    %422 = vmatprep.mubr.f32.mxu0 0.0
    %423 = vmatmul.mubr.f32.gmra.mrb[0].mxu0 %v331
    %v424 = vpop.f32.mrb[0].mxu0
    %v425 = vadd.f32 %v357, %v424
    %v426 = vpop.f32.mrb[0].mxu0
    %427 = vmatprep.mubr.f32.mxu0 0.0
    %428 = vmatmul.mubr.f32.gmra.mrb[0].mxu0 %v332
    %v429 = vpop.f32.mrb[0].mxu0
    %v430 = vadd.f32 %v357, %v429
    %v431 = vpop.f32.mrb[0].mxu0
    %432 = vdwg.mxu0
    %v433 = vadd.f32 %v425, %v430
    %v434 = vrot.slane %v433, 4
    %v435 = vadd.f32 %v433, %v434
    %v436 = vrot.slane %v435, 2
    %v437 = vadd.f32 %v435, %v436
    %v438 = vrot.slane %v437, 1
    %v439 = vadd.f32 %v437, %v438
    %v440 = vrcp.pop 16.0
    %v441 = vmul.f32 %v439, %v440
    %v442 = vsub.f32 %v425, %v441
    %v443 = vsub.f32 %v430, %v441
    %v444 = vmul.f32 %v442, %v442
    %v445 = vmul.f32 %v443, %v443
    %v446 = vadd.f32 %v444, %v445
    %v447 = vrot.slane %v446, 4
    %v448 = vadd.f32 %v446, %v447
    %v449 = vrot.slane %v448, 2
    %v450 = vadd.f32 %v448, %v449
    %v451 = vrot.slane %v450, 1
    %v452 = vadd.f32 %v450, %v451
    %v453 = vmul.f32 %v452, %v440
    %v454 = vadd.f32 %v453, 1e-05
    %v455 = vrsqrt.pop %v454
    %v456 = vmul.f32 %v336, %v455
    %v457 = vlaneseq
    %v458 = vshrl.u32 %v457, 7
    %v459 = vsub.s32 0, %v458
    %v460 = vrot.slane %v456, %v459
    %v461 = vmul.f32 %v442, %v460
    %v462 = vmul.f32 %v443, %v460
    %v463 = vlaneseq
    %v464 = vshrl.u32 %v463, 7
    %v465 = vsub.s32 0, %v464
    %v466 = vrot.slane %v337, %v465
    %v467 = vadd.f32 %v461, %v466
    %v468 = vadd.f32 %v462, %v466
    %vm469 = vcmp.gt.f32.partialorder %v467, 0.0
    %vm470 = vcmp.gt.f32.partialorder %v468, 0.0
    %v471 = vmul.f32 %v467, 1.442695
    %v472 = vpow.pop %v471
    %v473 = vmul.f32 %v468, 1.442695
    %v474 = vpow.pop %v473
    %v475 = vsub.f32 %v472, 1.0
    %v476 = vsub.f32 %v474, 1.0
    %v477 = vsel %vm469, %v467, %v475
    %v478 = vsel %vm470, %v468, %v476
    %s479 = scalar_lea.vmem [#allocation9], 128
    %v480 = vld [vmem:[%s479] sm:$0xff]
    %v481 = vld [vmem:[%s479 + $0x8] sm:$0xff]
    %v482 = vld [vmem:[%s479 + $0x10] sm:$0xff]
    %v483 = vld [vmem:[%s479 + $0x18] sm:$0xff]
    %v484 = vld [vmem:[%s479 + $0x20] sm:$0xff]
    %v485 = vld [vmem:[%s479 + $0x28] sm:$0xff]
    %v486 = vld [vmem:[%s479 + $0x30] sm:$0xff]
    %v487 = vld [vmem:[%s479 + $0x38] sm:$0xff]
    %v488 = vld [vmem:[%s479 + $0x40] sm:$0xff]
    %v489 = vld [vmem:[%s479 + $0x48] sm:$0xff]
    %v490 = vld [vmem:[%s479 + $0x50] sm:$0xff]
    %v491 = vld [vmem:[%s479 + $0x58] sm:$0xff]
    %v492 = vld [vmem:[%s479 + $0x60] sm:$0xff]
    %v493 = vld [vmem:[%s479 + $0x68] sm:$0xff]
    %v494 = vld [vmem:[%s479 + $0x70] sm:$0xff]
    %v495 = vld [vmem:[%s479 + $0x78] sm:$0xff]
    %v496 = vlaneseq
    %v497 = vshrl.u32 %v496, 7
    %v498 = vsub.s32 1, %v497
    %v499 = vrot.slane %v335, %v498
    %500 = vmatprep.subr.mxu0 0.0
    %501 = vmatpush1.msra.mxu0 %v480
    %502 = vmatprep.subr.mxu0 0.0
    %503 = vmatpush1.msra.mxu0 %v481
    %504 = vmatprep.subr.mxu0 0.0
    %505 = vmatpush1.msra.mxu0 %v482
    %506 = vmatprep.subr.mxu0 0.0
    %507 = vmatpush1.msra.mxu0 %v483
    %508 = vmatprep.subr.mxu0 0.0
    %509 = vmatpush1.msra.mxu0 %v484
    %510 = vmatprep.subr.mxu0 0.0
    %511 = vmatpush1.msra.mxu0 %v485
    %512 = vmatprep.subr.mxu0 0.0
    %513 = vmatpush1.msra.mxu0 %v486
    %514 = vmatprep.subr.mxu0 0.0
    %515 = vmatpush1.msra.mxu0 %v487
    %516 = vmatprep.subr.mxu0 0.0
    %517 = vmatpush1.msra.mxu0 %v488
    %518 = vmatprep.subr.mxu0 0.0
    %519 = vmatpush1.msra.mxu0 %v489
    %520 = vmatprep.subr.mxu0 0.0
    %521 = vmatpush1.msra.mxu0 %v490
    %522 = vmatprep.subr.mxu0 0.0
    %523 = vmatpush1.msra.mxu0 %v491
    %524 = vmatprep.subr.mxu0 0.0
    %525 = vmatpush1.msra.mxu0 %v492
    %526 = vmatprep.subr.mxu0 0.0
    %527 = vmatpush1.msra.mxu0 %v493
    %528 = vmatprep.subr.mxu0 0.0
    %529 = vmatpush1.msra.mxu0 %v494
    %530 = vmatprep.subr.mxu0 0.0
    %531 = vmatpush1.msra.mxu0 %v495
    %532 = vmatprep.subr.mxu0 0.0
    %533 = vmatpush1.msra.mxu0 0.0
    %534 = vmatprep.subr.mxu0 0.0
    %535 = vmatpush1.msra.mxu0 0.0
    %536 = vmatprep.subr.mxu0 0.0
    %537 = vmatpush1.msra.mxu0 0.0
    %538 = vmatprep.subr.mxu0 0.0
    %539 = vmatpush1.msra.mxu0 0.0
    %540 = vmatprep.subr.mxu0 0.0
    %541 = vmatpush1.msra.mxu0 0.0
    %542 = vmatprep.subr.mxu0 0.0
    %543 = vmatpush1.msra.mxu0 0.0
    %544 = vmatprep.subr.mxu0 0.0
    %545 = vmatpush1.msra.mxu0 0.0
    %546 = vmatprep.subr.mxu0 0.0
    %547 = vmatpush1.msra.mxu0 0.0
    %548 = vmatprep.subr.mxu0 0.0
    %549 = vmatpush1.msra.mxu0 0.0
    %550 = vmatprep.subr.mxu0 0.0
    %551 = vmatpush1.msra.mxu0 0.0
    %552 = vmatprep.subr.mxu0 0.0
    %553 = vmatpush1.msra.mxu0 0.0
    %554 = vmatprep.subr.mxu0 0.0
    %555 = vmatpush1.msra.mxu0 0.0
    %556 = vmatprep.subr.mxu0 0.0
    %557 = vmatpush1.msra.mxu0 0.0
    %558 = vmatprep.subr.mxu0 0.0
    %559 = vmatpush1.msra.mxu0 0.0
    %560 = vmatprep.subr.mxu0 0.0
    %561 = vmatpush1.msra.mxu0 0.0
    %562 = vmatprep.subr.mxu0 0.0
    %563 = vmatpush1.msra.mxu0 0.0
    %564 = vmatprep.mubr.f32.mxu0 0.0
    %565 = vmatmul.mubr.f32.gmra.mrb[0].mxu0 %v477
    %v566 = vpop.f32.mrb[0].mxu0
    %v567 = vadd.f32 %v499, %v566
    %v568 = vpop.f32.mrb[0].mxu0
    %569 = vmatprep.mubr.f32.mxu0 0.0
    %570 = vmatmul.mubr.f32.gmra.mrb[0].mxu0 %v478
    %v571 = vpop.f32.mrb[0].mxu0
    %v572 = vadd.f32 %v499, %v571
    %v573 = vpop.f32.mrb[0].mxu0
    %574 = vdwg.mxu0
    %v575 = vadd.f32 %v567, %v572
    %v576 = vrot.slane %v575, 4
    %v577 = vadd.f32 %v575, %v576
    %v578 = vrot.slane %v577, 2
    %v579 = vadd.f32 %v577, %v578
    %v580 = vrot.slane %v579, 1
    %v581 = vadd.f32 %v579, %v580
    %v582 = vmul.f32 %v581, %v440
    %v583 = vsub.f32 %v567, %v582
    %v584 = vsub.f32 %v572, %v582
    %v585 = vmul.f32 %v583, %v583
    %v586 = vmul.f32 %v584, %v584
    %v587 = vadd.f32 %v585, %v586
    %v588 = vrot.slane %v587, 4
    %v589 = vadd.f32 %v587, %v588
    %v590 = vrot.slane %v589, 2
    %v591 = vadd.f32 %v589, %v590
    %v592 = vrot.slane %v591, 1
    %v593 = vadd.f32 %v591, %v592
    %v594 = vmul.f32 %v593, %v440
    %v595 = vadd.f32 %v594, 1e-05
    %v596 = vrsqrt.pop %v595
    %v597 = vmul.f32 %v336, %v596
    %v598 = vlaneseq
    %v599 = vshrl.u32 %v598, 7
    %v600 = vsub.s32 1, %v599
    %v601 = vrot.slane %v597, %v600
    %v602 = vmul.f32 %v583, %v601
    %v603 = vmul.f32 %v584, %v601
    %v604 = vlaneseq
    %v605 = vshrl.u32 %v604, 7
    %v606 = vsub.s32 1, %v605
    %v607 = vrot.slane %v337, %v606
    %v608 = vadd.f32 %v602, %v607
    %v609 = vadd.f32 %v603, %v607
    %vm610 = vcmp.gt.f32.partialorder %v608, 0.0
    %vm611 = vcmp.gt.f32.partialorder %v609, 0.0
    %v612 = vmul.f32 %v608, 1.442695
    %v613 = vpow.pop %v612
    %v614 = vmul.f32 %v609, 1.442695
    %v615 = vpow.pop %v614
    %v616 = vsub.f32 %v613, 1.0
    %v617 = vsub.f32 %v615, 1.0
    %v618 = vsel %vm610, %v608, %v616
    %v619 = vsel %vm611, %v609, %v617
    %s620 = scalar_lea.vmem [#allocation9], 256
    %v621 = vld [vmem:[%s620] sm:$0xff]
    %v622 = vld [vmem:[%s620 + $0x8] sm:$0xff]
    %v623 = vld [vmem:[%s620 + $0x10] sm:$0xff]
    %v624 = vld [vmem:[%s620 + $0x18] sm:$0xff]
    %v625 = vld [vmem:[%s620 + $0x20] sm:$0xff]
    %v626 = vld [vmem:[%s620 + $0x28] sm:$0xff]
    %v627 = vld [vmem:[%s620 + $0x30] sm:$0xff]
    %v628 = vld [vmem:[%s620 + $0x38] sm:$0xff]
    %v629 = vld [vmem:[%s620 + $0x40] sm:$0xff]
    %v630 = vld [vmem:[%s620 + $0x48] sm:$0xff]
    %v631 = vld [vmem:[%s620 + $0x50] sm:$0xff]
    %v632 = vld [vmem:[%s620 + $0x58] sm:$0xff]
    %v633 = vld [vmem:[%s620 + $0x60] sm:$0xff]
    %v634 = vld [vmem:[%s620 + $0x68] sm:$0xff]
    %v635 = vld [vmem:[%s620 + $0x70] sm:$0xff]
    %v636 = vld [vmem:[%s620 + $0x78] sm:$0xff]
    %v637 = vlaneseq
    %v638 = vshrl.u32 %v637, 7
    %v639 = vsub.s32 2, %v638
    %v640 = vrot.slane %v335, %v639
    %641 = vmatprep.subr.mxu0 0.0
    %642 = vmatpush1.msra.mxu0 %v621
    %643 = vmatprep.subr.mxu0 0.0
    %644 = vmatpush1.msra.mxu0 %v622
    %645 = vmatprep.subr.mxu0 0.0
    %646 = vmatpush1.msra.mxu0 %v623
    %647 = vmatprep.subr.mxu0 0.0
    %648 = vmatpush1.msra.mxu0 %v624
    %649 = vmatprep.subr.mxu0 0.0
    %650 = vmatpush1.msra.mxu0 %v625
    %651 = vmatprep.subr.mxu0 0.0
    %652 = vmatpush1.msra.mxu0 %v626
    %653 = vmatprep.subr.mxu0 0.0
    %654 = vmatpush1.msra.mxu0 %v627
    %655 = vmatprep.subr.mxu0 0.0
    %656 = vmatpush1.msra.mxu0 %v628
    %657 = vmatprep.subr.mxu0 0.0
    %658 = vmatpush1.msra.mxu0 %v629
    %659 = vmatprep.subr.mxu0 0.0
    %660 = vmatpush1.msra.mxu0 %v630
    %661 = vmatprep.subr.mxu0 0.0
    %662 = vmatpush1.msra.mxu0 %v631
    %663 = vmatprep.subr.mxu0 0.0
    %664 = vmatpush1.msra.mxu0 %v632
    %665 = vmatprep.subr.mxu0 0.0
    %666 = vmatpush1.msra.mxu0 %v633
    %667 = vmatprep.subr.mxu0 0.0
    %668 = vmatpush1.msra.mxu0 %v634
    %669 = vmatprep.subr.mxu0 0.0
    %670 = vmatpush1.msra.mxu0 %v635
    %671 = vmatprep.subr.mxu0 0.0
    %672 = vmatpush1.msra.mxu0 %v636
    %673 = vmatprep.subr.mxu0 0.0
    %674 = vmatpush1.msra.mxu0 0.0
    %675 = vmatprep.subr.mxu0 0.0
    %676 = vmatpush1.msra.mxu0 0.0
    %677 = vmatprep.subr.mxu0 0.0
    %678 = vmatpush1.msra.mxu0 0.0
    %679 = vmatprep.subr.mxu0 0.0
    %680 = vmatpush1.msra.mxu0 0.0
    %681 = vmatprep.subr.mxu0 0.0
    %682 = vmatpush1.msra.mxu0 0.0
    %683 = vmatprep.subr.mxu0 0.0
    %684 = vmatpush1.msra.mxu0 0.0
    %685 = vmatprep.subr.mxu0 0.0
    %686 = vmatpush1.msra.mxu0 0.0
    %687 = vmatprep.subr.mxu0 0.0
    %688 = vmatpush1.msra.mxu0 0.0
    %689 = vmatprep.subr.mxu0 0.0
    %690 = vmatpush1.msra.mxu0 0.0
    %691 = vmatprep.subr.mxu0 0.0
    %692 = vmatpush1.msra.mxu0 0.0
    %693 = vmatprep.subr.mxu0 0.0
    %694 = vmatpush1.msra.mxu0 0.0
    %695 = vmatprep.subr.mxu0 0.0
    %696 = vmatpush1.msra.mxu0 0.0
    %697 = vmatprep.subr.mxu0 0.0
    %698 = vmatpush1.msra.mxu0 0.0
    %699 = vmatprep.subr.mxu0 0.0
    %700 = vmatpush1.msra.mxu0 0.0
    %701 = vmatprep.subr.mxu0 0.0
    %702 = vmatpush1.msra.mxu0 0.0
    %703 = vmatprep.subr.mxu0 0.0
    %704 = vmatpush1.msra.mxu0 0.0
    %705 = vmatprep.mubr.f32.mxu0 0.0
    %706 = vmatmul.mubr.f32.gmra.mrb[0].mxu0 %v618
    %v707 = vpop.f32.mrb[0].mxu0
    %v708 = vadd.f32 %v640, %v707
    %v709 = vpop.f32.mrb[0].mxu0
    %710 = vmatprep.mubr.f32.mxu0 0.0
    %711 = vmatmul.mubr.f32.gmra.mrb[0].mxu0 %v619
    %v712 = vpop.f32.mrb[0].mxu0
    %v713 = vadd.f32 %v640, %v712
    %v714 = vpop.f32.mrb[0].mxu0
    %715 = vdwg.mxu0
    %v716 = vadd.f32 %v708, %v713
    %v717 = vrot.slane %v716, 4
    %v718 = vadd.f32 %v716, %v717
    %v719 = vrot.slane %v718, 2
    %v720 = vadd.f32 %v718, %v719
    %v721 = vrot.slane %v720, 1
    %v722 = vadd.f32 %v720, %v721
    %v723 = vmul.f32 %v722, %v440
    %v724 = vsub.f32 %v708, %v723
    %v725 = vsub.f32 %v713, %v723
    %v726 = vmul.f32 %v724, %v724
    %v727 = vmul.f32 %v725, %v725
    %v728 = vadd.f32 %v726, %v727
    %v729 = vrot.slane %v728, 4
    %v730 = vadd.f32 %v728, %v729
    %v731 = vrot.slane %v730, 2
    %v732 = vadd.f32 %v730, %v731
    %v733 = vrot.slane %v732, 1
    %v734 = vadd.f32 %v732, %v733
    %v735 = vmul.f32 %v734, %v440
    %v736 = vadd.f32 %v735, 1e-05
    %v737 = vrsqrt.pop %v736
    %v738 = vmul.f32 %v336, %v737
    %v739 = vlaneseq
    %v740 = vshrl.u32 %v739, 7
    %v741 = vsub.s32 2, %v740
    %v742 = vrot.slane %v738, %v741
    %v743 = vmul.f32 %v724, %v742
    %v744 = vmul.f32 %v725, %v742
    %v745 = vlaneseq
    %v746 = vshrl.u32 %v745, 7
    %v747 = vsub.s32 2, %v746
    %v748 = vrot.slane %v337, %v747
    %v749 = vadd.f32 %v743, %v748
    %v750 = vadd.f32 %v744, %v748
    %v751 = vld [vmem:[#allocation2] sm:$0xff]
    %v752 = vld [vmem:[#allocation2 + $0x8] sm:$0xff]
    %v753 = vadd.f32 %v749, %v751
    %v754 = vadd.f32 %v750, %v752
    %vm755 = vcmp.gt.f32.partialorder %v753, 0.0
    %vm756 = vcmp.gt.f32.partialorder %v754, 0.0
    %v757 = vmul.f32 %v753, 1.442695
    %v758 = vpow.pop %v757
    %v759 = vmul.f32 %v754, 1.442695
    %v760 = vpow.pop %v759
    %v761 = vsub.f32 %v758, 1.0
    %v762 = vsub.f32 %v760, 1.0
    %v763 = vsel %vm755, %v753, %v761
    %v764 = vsel %vm756, %v754, %v762
    %v765 = vld [vmem:[#allocation10] sm:$0xff]
    %v766 = vld [vmem:[#allocation10 + $0x8] sm:$0xff]
    %v767 = vld [vmem:[#allocation10 + $0x10] sm:$0xff]
    %v768 = vld [vmem:[#allocation10 + $0x18] sm:$0xff]
    %v769 = vld [vmem:[#allocation10 + $0x20] sm:$0xff]
    %v770 = vld [vmem:[#allocation10 + $0x28] sm:$0xff]
    %v771 = vld [vmem:[#allocation10 + $0x30] sm:$0xff]
    %v772 = vld [vmem:[#allocation10 + $0x38] sm:$0xff]
    %v773 = vld [vmem:[#allocation10 + $0x40] sm:$0xff]
    %v774 = vld [vmem:[#allocation10 + $0x48] sm:$0xff]
    %v775 = vld [vmem:[#allocation10 + $0x50] sm:$0xff]
    %v776 = vld [vmem:[#allocation10 + $0x58] sm:$0xff]
    %v777 = vld [vmem:[#allocation10 + $0x60] sm:$0xff]
    %v778 = vld [vmem:[#allocation10 + $0x68] sm:$0xff]
    %v779 = vld [vmem:[#allocation10 + $0x70] sm:$0xff]
    %v780 = vld [vmem:[#allocation10 + $0x78] sm:$0xff]
    %v781 = vld [vmem:[%s10] sm:$0x1]
    %v783 = vlaneseq
    %v784 = vshrl.u32 %v783, 7
    %v785 = vsub.s32 0, %v784
    %v786 = vrot.slane %v781, %v785
    %788 = vmatprep.subr.mxu0 0.0
    %789 = vmatpush1.msra.mxu0 %v765
    %790 = vmatprep.subr.mxu0 0.0
    %791 = vmatpush1.msra.mxu0 %v766
    %792 = vmatprep.subr.mxu0 0.0
    %793 = vmatpush1.msra.mxu0 %v767
    %794 = vmatprep.subr.mxu0 0.0
    %795 = vmatpush1.msra.mxu0 %v768
    %796 = vmatprep.subr.mxu0 0.0
    %797 = vmatpush1.msra.mxu0 %v769
    %798 = vmatprep.subr.mxu0 0.0
    %799 = vmatpush1.msra.mxu0 %v770
    %800 = vmatprep.subr.mxu0 0.0
    %801 = vmatpush1.msra.mxu0 %v771
    %802 = vmatprep.subr.mxu0 0.0
    %803 = vmatpush1.msra.mxu0 %v772
    %804 = vmatprep.subr.mxu0 0.0
    %805 = vmatpush1.msra.mxu0 %v773
    %806 = vmatprep.subr.mxu0 0.0
    %807 = vmatpush1.msra.mxu0 %v774
    %808 = vmatprep.subr.mxu0 0.0
    %809 = vmatpush1.msra.mxu0 %v775
    %810 = vmatprep.subr.mxu0 0.0
    %811 = vmatpush1.msra.mxu0 %v776
    %812 = vmatprep.subr.mxu0 0.0
    %813 = vmatpush1.msra.mxu0 %v777
    %814 = vmatprep.subr.mxu0 0.0
    %815 = vmatpush1.msra.mxu0 %v778
    %816 = vmatprep.subr.mxu0 0.0
    %817 = vmatpush1.msra.mxu0 %v779
    %818 = vmatprep.subr.mxu0 0.0
    %819 = vmatpush1.msra.mxu0 %v780
    %820 = vmatprep.subr.mxu0 0.0
    %821 = vmatpush1.msra.mxu0 0.0
    %822 = vmatprep.subr.mxu0 0.0
    %823 = vmatpush1.msra.mxu0 0.0
    %824 = vmatprep.subr.mxu0 0.0
    %825 = vmatpush1.msra.mxu0 0.0
    %826 = vmatprep.subr.mxu0 0.0
    %827 = vmatpush1.msra.mxu0 0.0
    %828 = vmatprep.subr.mxu0 0.0
    %829 = vmatpush1.msra.mxu0 0.0
    %830 = vmatprep.subr.mxu0 0.0
    %831 = vmatpush1.msra.mxu0 0.0
    %832 = vmatprep.subr.mxu0 0.0
    %833 = vmatpush1.msra.mxu0 0.0
    %834 = vmatprep.subr.mxu0 0.0
    %835 = vmatpush1.msra.mxu0 0.0
    %836 = vmatprep.subr.mxu0 0.0
    %837 = vmatpush1.msra.mxu0 0.0
    %838 = vmatprep.subr.mxu0 0.0
    %839 = vmatpush1.msra.mxu0 0.0
    %840 = vmatprep.subr.mxu0 0.0
    %841 = vmatpush1.msra.mxu0 0.0
    %842 = vmatprep.subr.mxu0 0.0
    %843 = vmatpush1.msra.mxu0 0.0
    %844 = vmatprep.subr.mxu0 0.0
    %845 = vmatpush1.msra.mxu0 0.0
    %846 = vmatprep.subr.mxu0 0.0
    %847 = vmatpush1.msra.mxu0 0.0
    %848 = vmatprep.subr.mxu0 0.0
    %849 = vmatpush1.msra.mxu0 0.0
    %850 = vmatprep.subr.mxu0 0.0
    %851 = vmatpush1.msra.mxu0 0.0
    %852 = vmatprep.mubr.f32.mxu0 0.0
    %853 = vmatmul.mubr.f32.gmra.mrb[0].mxu0 %v763
    %v854 = vpop.f32.mrb[0].mxu0
    %v855 = vadd.f32 %v786, %v854
    %v856 = vpop.f32.mrb[0].mxu0
    %857 = vmatprep.mubr.f32.mxu0 0.0
    %858 = vmatmul.mubr.f32.gmra.mrb[0].mxu0 %v764
    %v859 = vpop.f32.mrb[0].mxu0
    %v860 = vadd.f32 %v786, %v859
    %v861 = vpop.f32.mrb[0].mxu0
    %862 = vdwg.mxu0
    %v863 = vadd.f32 %v855, %v860
    %864 = vadd.xlane.f32.xlu0 %v863
    %v865 = vpop.xlane.xlu0 %864
    %v866 = vrot.slane %v865, 4
    %v867 = vadd.f32 %v865, %v866
    %v868 = vrot.slane %v867, 2
    %v869 = vadd.f32 %v867, %v868
    %v870 = vrot.slane %v869, 1
    %v871 = vadd.f32 %v869, %v870
    %s872 = vtos %v871
    %v873 = vstv %s872
    %v874 = vmul.f32 %v855, %v855
    %v875 = vmul.f32 %v860, %v860
    %v876 = vadd.f32 %v874, %v875
    %877 = vadd.xlane.f32.xlu0 %v876
    %v878 = vpop.xlane.xlu0 %877
    %v879 = vrot.slane %v878, 4
    %v880 = vadd.f32 %v878, %v879
    %v881 = vrot.slane %v880, 2
    %v882 = vadd.f32 %v880, %v881
    %v883 = vrot.slane %v882, 1
    %v884 = vadd.f32 %v882, %v883
    %s885 = vtos %v884
    %v886 = vstv %s885
    %v887 = vmul.f32 %v873, 0.00390625
    %v888 = vmul.f32 %v886, 0.00390625
    %v889 = vmul.f32 %v887, %v887
    %v890 = vsub.f32 %v888, %v889
    %s891 = sld [smem:[#allocation3]]
    %s892 = sld [smem:[#allocation4]]
    %v893 = vadd.f32 %v890, 0.001
    %v894 = vrsqrt.pop %v893
    %v895 = vstv %s891
    %v896 = vmul.f32 %v895, %v894
    %v897 = vmul.f32 %v887, %v896
    %v898 = vstv %s892
    %v899 = vsub.f32 %v898, %v897
    %v900 = vmul.f32 %v855, %v896
    %v901 = vmul.f32 %v860, %v896
    %v902 = vadd.f32 %v900, %v899
    %v903 = vadd.f32 %v901, %v899
    %904 = vst [vmem:[%s13] sm:$0xff] %v902
    %905 = vst [vmem:[%s13 + $0x8] sm:$0xff] %v903
    // Predicated region
    $region70: #{latent_decoder_forward.1} parent=1 // pred_check
      _
    $region71: #{latent_decoder_forward.1} parent=1 // pred_check_branch
      %907 = sbr.rel (0) target = $region73
    $region72: #{latent_decoder_forward.1} parent=1 // pred_region
      _
    $region73: #{latent_decoder_forward.1} parent=1 // pred_fallthru
      _
    // Predicated region
    $region74: #{latent_decoder_forward.1} parent=1 // pred_check
      _
    $region75: #{latent_decoder_forward.1} parent=1 // pred_check_branch
      %909 = sbr.rel (0) target = $region77
    $region76: #{latent_decoder_forward.1} parent=1 // pred_region
      _
    $region77: #{latent_decoder_forward.1} parent=1 // pred_fallthru
      _
    %910 = vsyncpa [#allocation6], 1
    %911 = vsyncpa [#allocation8], 1
    %912 = vsyncpa [#allocation11], 1

</llo_original>
